<compile_context>
chip_gen: v5e
topology: v5e:2x2
jax: 0.10.0
libtpu: 0.0.40
codegen_flags: <defaults>
</compile_context>

<pallas_src>
import functools

import jax
import jax.numpy as jnp
from jax.experimental import pallas as pl
from jax.experimental.pallas import tpu as pltpu

_LANE = 128       # TPU lane width
_SUBLANE = 16     # batch-tile alignment (covers f32 8-row and bf16 16-row packing)
_MAX_BLOCK_B = 512  # 512-row tiles ~85% of HBM roofline on v6e; good on v5e too


def _round_up(x, m):
    return (x + m - 1) // m * m


def _cdiv(a, b):
    return -(-a // b)


def _gelu_exact(x):
    # nn.GELU() default (approximate='none'): 0.5 * x * (1 + erf(x / sqrt(2)))
    return 0.5 * x * (1.0 + jax.lax.erf(x * (1.0 / jnp.sqrt(2.0).astype(x.dtype))))


def _decoder_kernel_cat(compute_dtype,
                        d_ref, s_ref,
                        w1d_ref, w1s_ref, b1_ref, w2_ref, b2_ref, w3_ref, b3_ref,
                        o_ref):
    # Layer 1, split-W1: cat([d, s], 1) @ W1 == d @ W1[:D] + s @ W1[D:]  (no XLU concat).
    h = (jnp.dot(d_ref[...], w1d_ref[...], preferred_element_type=jnp.float32)
         + jnp.dot(s_ref[...], w1s_ref[...], preferred_element_type=jnp.float32)
         + b1_ref[...])
    h = _gelu_exact(h)
    h = jnp.dot(h.astype(compute_dtype), w2_ref[...],
                preferred_element_type=jnp.float32) + b2_ref[...]
    h = _gelu_exact(h)
    o = jnp.dot(h.astype(compute_dtype), w3_ref[...],
                preferred_element_type=jnp.float32) + b3_ref[...]
    o_ref[...] = o.astype(o_ref.dtype)


def _decoder_kernel_add(compute_dtype,
                        d_ref, s_ref,
                        w1_ref, b1_ref, w2_ref, b2_ref, w3_ref, b3_ref,
                        o_ref):
    # Layer 1, 'add' mode: one VPU add + a single MXU dot (W1 shipped once).
    x = d_ref[...] + s_ref[...]
    h = jnp.dot(x, w1_ref[...], preferred_element_type=jnp.float32) + b1_ref[...]
    h = _gelu_exact(h)
    h = jnp.dot(h.astype(compute_dtype), w2_ref[...],
                preferred_element_type=jnp.float32) + b2_ref[...]
    h = _gelu_exact(h)
    o = jnp.dot(h.astype(compute_dtype), w3_ref[...],
                preferred_element_type=jnp.float32) + b3_ref[...]
    o_ref[...] = o.astype(o_ref.dtype)


def prepare_params(params, *, dim_D, dim_S, rec="cat", compute_dtype=jnp.float32):
    """Split / zero-pad / cast the (already-transposed, (in, out)-layout) weights once.

    Hidden dim is zero-padded to a multiple of 128 (exact: gelu(0)=0 and the padded
    weight rows/cols are zero).  The output dim is NOT padded: emitting the true
    out_dim directly (masked stores) is cheaper than a wrapper-side column slice.
    """
    w1, b1, w2, b2, w3, b3 = params
    in_dim, hid = w1.shape
    out_dim = w3.shape[1]
    hid_p = _round_up(hid, _LANE)

    def pad2(a, rows, cols):
        return jnp.pad(a, ((0, rows - a.shape[0]), (0, cols - a.shape[1])))

    b1_p = pad2(jnp.reshape(b1, (1, -1)), 1, hid_p).astype(jnp.float32)
    w2_p = pad2(w2, hid_p, hid_p).astype(compute_dtype)
    b2_p = pad2(jnp.reshape(b2, (1, -1)), 1, hid_p).astype(jnp.float32)
    w3_p = pad2(w3, hid_p, out_dim).astype(compute_dtype)
    b3_p = jnp.reshape(b3, (1, -1)).astype(jnp.float32)

    if rec == "cat":
        assert in_dim == dim_D + dim_S, "cat mode: input_dim must equal dim_D + dim_S"
        w1d = pad2(w1[:dim_D], dim_D, hid_p).astype(compute_dtype)
        w1s = pad2(w1[dim_D:], dim_S, hid_p).astype(compute_dtype)
        weights = (w1d, w1s, b1_p, w2_p, b2_p, w3_p, b3_p)
    elif rec == "add":
        assert in_dim == dim_S == dim_D, "add mode: dims must all match"
        w1_p = pad2(w1, in_dim, hid_p).astype(compute_dtype)
        weights = (w1_p, b1_p, w2_p, b2_p, w3_p, b3_p)
    else:
        raise ValueError(f"unknown rec mode: {rec}")

    return {"rec": rec, "weights": weights, "out_dim": out_dim, "hid_p": hid_p}


def _pick_block_b(B, block_b):
    if block_b is not None:
        return _round_up(block_b, _SUBLANE)
    # >=2 grid steps whenever B spans more than one sublane tile, so the
    # "parallel" batch axis is actually sharded across v7x's two TensorCores;
    # tile capped at _MAX_BLOCK_B; cdiv-based sizing minimizes batch padding.
    num_tiles = max(_cdiv(B, _MAX_BLOCK_B), 2 if B > _SUBLANE else 1)
    return _round_up(_cdiv(B, num_tiles), _SUBLANE)


def eeg_decoder_forward(domain_h, semantic_h, prepared, *,
                        compute_dtype=jnp.float32, out_dtype=jnp.float32,
                        block_b=None):
    """Full decoder MLP in one Pallas call: batch-tiled parallel grid, weights
    VMEM-resident and single-buffered."""
    rec = prepared["rec"]
    weights = prepared["weights"]
    out_dim = prepared["out_dim"]
    hid_p = prepared["hid_p"]

    B, dim_D = domain_h.shape
    dim_S = semantic_h.shape[1]

    # Cast at the HBM boundary so the activation DMA moves compute_dtype bytes.
    domain_h = domain_h.astype(compute_dtype)
    semantic_h = semantic_h.astype(compute_dtype)

    block_b = _pick_block_b(B, block_b)
    B_pad = _round_up(B, block_b)
    if B_pad != B:
        pad = ((0, B_pad - B), (0, 0))
        domain_h = jnp.pad(domain_h, pad)
        semantic_h = jnp.pad(semantic_h, pad)
    grid = (B_pad // block_b,)

    def resident(shape):
        # Constant index map + single buffer: weight stays resident in VMEM with
        # no wasted second buffer (important for v7x's 64 MiB VMEM).
        return pl.BlockSpec(shape, lambda i: (0, 0), pipeline_mode=pl.Buffered(1))

    in_specs = [pl.BlockSpec((block_b, dim_D), lambda i: (i, 0)),
                pl.BlockSpec((block_b, dim_S), lambda i: (i, 0))]
    in_specs += [resident(w.shape) for w in weights]
    out_spec = pl.BlockSpec((block_b, out_dim), lambda i: (i, 0))

    kernel = _decoder_kernel_cat if rec == "cat" else _decoder_kernel_add

    act_itemsize = jnp.dtype(compute_dtype).itemsize
    out_itemsize = jnp.dtype(out_dtype).itemsize
    weight_bytes = sum(a.size * a.dtype.itemsize for a in weights)          # Buffered(1)
    act_in_bytes = 2 * block_b * (dim_D + dim_S) * act_itemsize             # double-buffered
    act_out_bytes = 2 * block_b * out_dim * out_itemsize
    interm_bytes = 2 * block_b * hid_p * 4                                  # f32 intermediates
    vmem_limit = int(1.5 * (weight_bytes + act_in_bytes + act_out_bytes + interm_bytes)) + (4 << 20)
    vmem_limit = max(min(vmem_limit, 64 << 20), 1 << 20)

    l1_in = (dim_D + dim_S) if rec == "cat" else dim_S
    flops = 2 * B_pad * (l1_in * hid_p + hid_p * hid_p + hid_p * out_dim)
    bytes_accessed = (B_pad * (dim_D + dim_S) * act_itemsize
                      + weight_bytes
                      + B_pad * out_dim * out_itemsize)

    out = pl.pallas_call(
        functools.partial(kernel, compute_dtype),
        out_shape=jax.ShapeDtypeStruct((B_pad, out_dim), out_dtype),
        grid=grid,
        in_specs=in_specs,
        out_specs=out_spec,
        compiler_params=pltpu.CompilerParams(
            dimension_semantics=("parallel",),
            vmem_limit_bytes=vmem_limit),
        cost_estimate=pl.CostEstimate(flops=flops,
                                      transcendentals=0,     # erf is a VPU polynomial
                                      bytes_accessed=bytes_accessed),
    )(domain_h, semantic_h, *weights)

    return out if B_pad == B else out[:B]


def init_params(key, input_dim, hidden_dim, output_dim):
    """weights_init_normal-style init: N(0, 0.02) weights, zero bias.
    Weights stored already transposed to (in, out)."""
    k1, k2, k3 = jax.random.split(key, 3)
    std = 0.02
    w1 = jax.random.normal(k1, (input_dim, hidden_dim), jnp.float32) * std
    b1 = jnp.zeros((hidden_dim,), jnp.float32)
    w2 = jax.random.normal(k2, (hidden_dim, hidden_dim), jnp.float32) * std
    b2 = jnp.zeros((hidden_dim,), jnp.float32)
    w3 = jax.random.normal(k3, (hidden_dim, output_dim), jnp.float32) * std
    b3 = jnp.zeros((output_dim,), jnp.float32)
    return (w1, b1, w2, b2, w3, b3)


def reference_forward(domain_h, semantic_h, params, *, rec="cat"):
    """Pure-JAX reference matching the PyTorch module."""
    w1, b1, w2, b2, w3, b3 = params
    x = jnp.concatenate([domain_h, semantic_h], axis=1) if rec == "cat" else domain_h + semantic_h
    h = jax.nn.gelu(x @ w1 + b1, approximate=False)
    h = jax.nn.gelu(h @ w2 + b2, approximate=False)
    return h @ w3 + b3


if __name__ == "__main__":
    # Small shapes consistent with the module:
    #   opt.output_dim_D = 32, opt.output_dim_S = 32, opt.hidden_dim_dec = 32,
    #   output_dim = 16, batch = 8.
    B = 8
    dim_D, dim_S = 32, 32
    hidden_dim = 32
    output_dim = 16

    key = jax.random.PRNGKey(0)
    k_d, k_s, k_p1, k_p2 = jax.random.split(key, 4)
    domain_h = jax.random.normal(k_d, (B, dim_D), jnp.float32)
    semantic_h = jax.random.normal(k_s, (B, dim_S), jnp.float32)

    # ---- rec='cat' ----------------------------------------------------------
    params_cat = init_params(k_p1, dim_D + dim_S, hidden_dim, output_dim)
    ref_cat = reference_forward(domain_h, semantic_h, params_cat, rec="cat")

    prep_f32 = prepare_params(params_cat, dim_D=dim_D, dim_S=dim_S, rec="cat",
                              compute_dtype=jnp.float32)
    out_f32 = eeg_decoder_forward(domain_h, semantic_h, prep_f32,
                                  compute_dtype=jnp.float32)
    out_f32 = jax.block_until_ready(out_f32)
    assert out_f32.shape == (B, output_dim)
    assert jnp.allclose(out_f32, ref_cat, atol=1e-5, rtol=1e-5), "cat/f32 mismatch"

    # bf16 MXU fast path (valid on v5e/v6e/v7x): bf16 activations/weights cross
    # HBM, accumulation / bias / GELU stay f32.
    prep_bf16 = prepare_params(params_cat, dim_D=dim_D, dim_S=dim_S, rec="cat",
                               compute_dtype=jnp.bfloat16)
    out_bf16 = eeg_decoder_forward(domain_h, semantic_h, prep_bf16,
                                   compute_dtype=jnp.bfloat16)
    out_bf16 = jax.block_until_ready(out_bf16)
    assert out_bf16.shape == (B, output_dim)
    assert jnp.allclose(out_bf16, ref_cat, atol=5e-3, rtol=5e-2), "cat/bf16 mismatch"

    # ---- rec='add' (single-W1 kernel) ---------------------------------------
    params_add = init_params(k_p2, dim_S, hidden_dim, output_dim)
    ref_add = reference_forward(domain_h, semantic_h, params_add, rec="add")
    prep_add = prepare_params(params_add, dim_D=dim_D, dim_S=dim_S, rec="add",
                              compute_dtype=jnp.float32)
    out_add = eeg_decoder_forward(domain_h, semantic_h, prep_add,
                                  compute_dtype=jnp.float32)
    out_add = jax.block_until_ready(out_add)
    assert out_add.shape == (B, output_dim)
    assert jnp.allclose(out_add, ref_add, atol=1e-5, rtol=1e-5), "add/f32 mismatch"

    print("KERNEL_OK")
</pallas_src>

<mosaic_0001>
module attributes {stable_mosaic.version = 11 : i64} {
  func.func @_decoder_kernel_cat(%arg0: i32, %arg1: memref<16x32xf32, #tpu.memory_space<vmem>>, %arg2: memref<16x32xf32, #tpu.memory_space<vmem>>, %arg3: memref<32x128xf32, #tpu.memory_space<vmem>>, %arg4: memref<32x128xf32, #tpu.memory_space<vmem>>, %arg5: memref<1x128xf32, #tpu.memory_space<vmem>>, %arg6: memref<128x128xf32, #tpu.memory_space<vmem>>, %arg7: memref<1x128xf32, #tpu.memory_space<vmem>>, %arg8: memref<128x16xf32, #tpu.memory_space<vmem>>, %arg9: memref<1x16xf32, #tpu.memory_space<vmem>>, %arg10: memref<16x16xf32, #tpu.memory_space<vmem>>) attributes {dimension_semantics = [#tpu.dimension_semantics<parallel>], iteration_bounds = array<i64: 1>, scalar_prefetch = 0 : i64, scratch_operands = 0 : i64, tpu.core_type = #tpu.core_type<tc>, window_params = [{transform_indices = @transform_0, window_bounds = array<i64: 16, 32>}, {transform_indices = @transform_1, window_bounds = array<i64: 16, 32>}, {pipeline_mode = #tpu.pipeline_mode<synchronous>, transform_indices = @transform_2, window_bounds = array<i64: 32, 128>}, {pipeline_mode = #tpu.pipeline_mode<synchronous>, transform_indices = @transform_3, window_bounds = array<i64: 32, 128>}, {pipeline_mode = #tpu.pipeline_mode<synchronous>, transform_indices = @transform_4, window_bounds = array<i64: 1, 128>}, {pipeline_mode = #tpu.pipeline_mode<synchronous>, transform_indices = @transform_5, window_bounds = array<i64: 128, 128>}, {pipeline_mode = #tpu.pipeline_mode<synchronous>, transform_indices = @transform_6, window_bounds = array<i64: 1, 128>}, {pipeline_mode = #tpu.pipeline_mode<synchronous>, transform_indices = @transform_7, window_bounds = array<i64: 128, 16>}, {pipeline_mode = #tpu.pipeline_mode<synchronous>, transform_indices = @transform_8, window_bounds = array<i64: 1, 16>}, {transform_indices = @transform_9, window_bounds = array<i64: 16, 16>}]} {
    %c0 = arith.constant 0 : index
    %c0_0 = arith.constant 0 : index
    %0 = vector.load %arg1[%c0, %c0_0] : memref<16x32xf32, #tpu.memory_space<vmem>>, vector<16x32xf32>
    %c0_1 = arith.constant 0 : index
    %c0_2 = arith.constant 0 : index
    %1 = vector.load %arg3[%c0_1, %c0_2] : memref<32x128xf32, #tpu.memory_space<vmem>>, vector<32x128xf32>
    %cst = arith.constant dense<0.000000e+00> : vector<16x128xf32>
    %2 = tpu.matmul %0, %1, %cst {dimension_numbers = #tpu.dot_dimension_numbers<[1], [0], [0], [1], [0, 0, 1, 1], [], []>} : vector<16x32xf32>, vector<32x128xf32>, vector<16x128xf32> -> vector<16x128xf32>
    %c0_3 = arith.constant 0 : index
    %c0_4 = arith.constant 0 : index
    %3 = vector.load %arg2[%c0_3, %c0_4] : memref<16x32xf32, #tpu.memory_space<vmem>>, vector<16x32xf32>
    %c0_5 = arith.constant 0 : index
    %c0_6 = arith.constant 0 : index
    %4 = vector.load %arg4[%c0_5, %c0_6] : memref<32x128xf32, #tpu.memory_space<vmem>>, vector<32x128xf32>
    %cst_7 = arith.constant dense<0.000000e+00> : vector<16x128xf32>
    %5 = tpu.matmul %3, %4, %cst_7 {dimension_numbers = #tpu.dot_dimension_numbers<[1], [0], [0], [1], [0, 0, 1, 1], [], []>} : vector<16x32xf32>, vector<32x128xf32>, vector<16x128xf32> -> vector<16x128xf32>
    %6 = arith.addf %2, %5 : vector<16x128xf32>
    %c0_8 = arith.constant 0 : index
    %c0_9 = arith.constant 0 : index
    %7 = vector.load %arg5[%c0_8, %c0_9] : memref<1x128xf32, #tpu.memory_space<vmem>>, vector<1x128xf32>
    %8 = vector.broadcast %7 : vector<1x128xf32> to vector<16x128xf32>
    %9 = arith.addf %6, %8 : vector<16x128xf32>
    %cst_10 = arith.constant 5.000000e-01 : f32
    %10 = vector.broadcast %cst_10 : f32 to vector<16x128xf32>
    %11 = arith.mulf %10, %9 : vector<16x128xf32>
    %cst_11 = arith.constant 2.000000e+00 : f32
    %12 = math.sqrt %cst_11 : f32
    %cst_12 = arith.constant 1.000000e+00 : f32
    %13 = arith.divf %cst_12, %12 : f32
    %14 = vector.broadcast %13 : f32 to vector<16x128xf32>
    %15 = arith.mulf %9, %14 : vector<16x128xf32>
    %16 = math.erf %15 : vector<16x128xf32>
    %cst_13 = arith.constant 1.000000e+00 : f32
    %17 = vector.broadcast %cst_13 : f32 to vector<16x128xf32>
    %18 = arith.addf %17, %16 : vector<16x128xf32>
    %19 = arith.mulf %11, %18 : vector<16x128xf32>
    %c0_14 = arith.constant 0 : index
    %c0_15 = arith.constant 0 : index
    %20 = vector.load %arg6[%c0_14, %c0_15] : memref<128x128xf32, #tpu.memory_space<vmem>>, vector<128x128xf32>
    %cst_16 = arith.constant dense<0.000000e+00> : vector<16x128xf32>
    %21 = tpu.matmul %19, %20, %cst_16 {dimension_numbers = #tpu.dot_dimension_numbers<[1], [0], [0], [1], [0, 0, 1, 1], [], []>} : vector<16x128xf32>, vector<128x128xf32>, vector<16x128xf32> -> vector<16x128xf32>
    %c0_17 = arith.constant 0 : index
    %c0_18 = arith.constant 0 : index
    %22 = vector.load %arg7[%c0_17, %c0_18] : memref<1x128xf32, #tpu.memory_space<vmem>>, vector<1x128xf32>
    %23 = vector.broadcast %22 : vector<1x128xf32> to vector<16x128xf32>
    %24 = arith.addf %21, %23 : vector<16x128xf32>
    %cst_19 = arith.constant 5.000000e-01 : f32
    %25 = vector.broadcast %cst_19 : f32 to vector<16x128xf32>
    %26 = arith.mulf %25, %24 : vector<16x128xf32>
    %cst_20 = arith.constant 2.000000e+00 : f32
    %27 = math.sqrt %cst_20 : f32
    %cst_21 = arith.constant 1.000000e+00 : f32
    %28 = arith.divf %cst_21, %27 : f32
    %29 = vector.broadcast %28 : f32 to vector<16x128xf32>
    %30 = arith.mulf %24, %29 : vector<16x128xf32>
    %31 = math.erf %30 : vector<16x128xf32>
    %cst_22 = arith.constant 1.000000e+00 : f32
    %32 = vector.broadcast %cst_22 : f32 to vector<16x128xf32>
    %33 = arith.addf %32, %31 : vector<16x128xf32>
    %34 = arith.mulf %26, %33 : vector<16x128xf32>
    %c0_23 = arith.constant 0 : index
    %c0_24 = arith.constant 0 : index
    %35 = vector.load %arg8[%c0_23, %c0_24] : memref<128x16xf32, #tpu.memory_space<vmem>>, vector<128x16xf32>
    %cst_25 = arith.constant dense<0.000000e+00> : vector<16x16xf32>
    %36 = tpu.matmul %34, %35, %cst_25 {dimension_numbers = #tpu.dot_dimension_numbers<[1], [0], [0], [1], [0, 0, 1, 1], [], []>} : vector<16x128xf32>, vector<128x16xf32>, vector<16x16xf32> -> vector<16x16xf32>
    %c0_26 = arith.constant 0 : index
    %c0_27 = arith.constant 0 : index
    %37 = vector.load %arg9[%c0_26, %c0_27] : memref<1x16xf32, #tpu.memory_space<vmem>>, vector<1x16xf32>
    %38 = vector.broadcast %37 : vector<1x16xf32> to vector<16x16xf32>
    %39 = arith.addf %36, %38 : vector<16x16xf32>
    %c0_28 = arith.constant 0 : index
    %c0_29 = arith.constant 0 : index
    %40 = vector.load %arg10[%c0_28, %c0_29] : memref<16x16xf32, #tpu.memory_space<vmem>>, vector<16x16xf32>
    tpu.vector_store %arg10[%c0_28, %c0_29], %39 {strides = array<i32>} : memref<16x16xf32, #tpu.memory_space<vmem>>, vector<16x16xf32>,
    return
  }
  func.func @transform_0(%arg0: i32) -> (i32, i32) {
    %c0_i32 = arith.constant 0 : i32
    %c0_i32_0 = arith.constant 0 : i32
    return %arg0, %c0_i32 : i32, i32
  }
  func.func @transform_1(%arg0: i32) -> (i32, i32) {
    %c0_i32 = arith.constant 0 : i32
    %c0_i32_0 = arith.constant 0 : i32
    return %arg0, %c0_i32 : i32, i32
  }
  func.func @transform_2(%arg0: i32) -> (i32, i32) {
    %c0_i32 = arith.constant 0 : i32
    %c0_i32_0 = arith.constant 0 : i32
    %c0_i32_1 = arith.constant 0 : i32
    return %c0_i32, %c0_i32_0 : i32, i32
  }
  func.func @transform_3(%arg0: i32) -> (i32, i32) {
    %c0_i32 = arith.constant 0 : i32
    %c0_i32_0 = arith.constant 0 : i32
    %c0_i32_1 = arith.constant 0 : i32
    return %c0_i32, %c0_i32_0 : i32, i32
  }
  func.func @transform_4(%arg0: i32) -> (i32, i32) {
    %c0_i32 = arith.constant 0 : i32
    %c0_i32_0 = arith.constant 0 : i32
    %c0_i32_1 = arith.constant 0 : i32
    return %c0_i32, %c0_i32_0 : i32, i32
  }
  func.func @transform_5(%arg0: i32) -> (i32, i32) {
    %c0_i32 = arith.constant 0 : i32
    %c0_i32_0 = arith.constant 0 : i32
    %c0_i32_1 = arith.constant 0 : i32
    return %c0_i32, %c0_i32_0 : i32, i32
  }
  func.func @transform_6(%arg0: i32) -> (i32, i32) {
    %c0_i32 = arith.constant 0 : i32
    %c0_i32_0 = arith.constant 0 : i32
    %c0_i32_1 = arith.constant 0 : i32
    return %c0_i32, %c0_i32_0 : i32, i32
  }
  func.func @transform_7(%arg0: i32) -> (i32, i32) {
    %c0_i32 = arith.constant 0 : i32
    %c0_i32_0 = arith.constant 0 : i32
    %c0_i32_1 = arith.constant 0 : i32
    return %c0_i32, %c0_i32_0 : i32, i32
  }
  func.func @transform_8(%arg0: i32) -> (i32, i32) {
    %c0_i32 = arith.constant 0 : i32
    %c0_i32_0 = arith.constant 0 : i32
    %c0_i32_1 = arith.constant 0 : i32
    return %c0_i32, %c0_i32_0 : i32, i32
  }
  func.func @transform_9(%arg0: i32) -> (i32, i32) {
    %c0_i32 = arith.constant 0 : i32
    %c0_i32_0 = arith.constant 0 : i32
    return %arg0, %c0_i32 : i32, i32
  }
}

</mosaic_0001>

<llo_original>
// kernel: tpu_custom_call.1
$region0: #{tpu_custom_call.1}
  #allocation0 [shape = 'u32[]', space=smem, size = 0x4, offset = 0x4, fixed_abs, tag = 'smem constant byte address 0x4 - core index']
  #allocation1 [shape = 'u32[72,128]{1,0:T(1,128)}', space=vmem, size = 0x9000, scoped, tag = 'internal scratch']
  %s0 = inlined_call_operand.vmem [shape: f32[16,32], index: 0, kind: input, shape index: {}]
  %s1 = inlined_call_operand.hbm [shape: f32[16,32], index: 1, kind: input, shape index: {}]
  %s2 = inlined_call_operand.hbm [shape: f32[32,128], index: 2, kind: input, shape index: {}]
  %s3 = inlined_call_operand.hbm [shape: f32[32,128], index: 3, kind: input, shape index: {}]
  %s4 = inlined_call_operand.vmem [shape: f32[1,128], index: 4, kind: input, shape index: {}]
  %s5 = inlined_call_operand.vmem [shape: f32[128,128], index: 5, kind: input, shape index: {}]
  %s6 = inlined_call_operand.vmem [shape: f32[1,128], index: 6, kind: input, shape index: {}]
  %s7 = inlined_call_operand.vmem [shape: f32[128,16], index: 7, kind: input, shape index: {}]
  %s8 = inlined_call_operand.vmem [shape: f32[1,16], index: 8, kind: input, shape index: {}]
  %s9 = inlined_call_operand.hbm [shape: f32[16,16], index: 9, kind: output, shape index: {}]
  %s10 = sld [smem:[#allocation0]]
  $region58: #{tpu_custom_call.1} parent=0
    _
  %s12 = ssub.s32 1, %s10
  %s13 = scalar_select 0, %s12, %s10
  $region1: #{tpu_custom_call.1} parent=0
    #allocation2 [shape = 'u8[8192]{0}', space=vmem, size = 0x2000, scoped, tag = 'input window, operand 1, single buffered']
    #allocation3 [shape = 's32[1]{0}', space=sflag, size = 0x4, scoped, tag = 'scoped memory for tpu_custom_call.1']
    #allocation4 [shape = 's32[1]{0}', space=sflag, size = 0x4, scoped, tag = 'scoped memory for tpu_custom_call.1']
    #allocation5 [shape = 'u8[16384]{0}', space=vmem, size = 0x4000, scoped, tag = 'input window, operand 2, single buffered']
    #allocation6 [shape = 's32[1]{0}', space=sflag, size = 0x4, scoped, tag = 'scoped memory for tpu_custom_call.1']
    #allocation7 [shape = 'u8[16384]{0}', space=vmem, size = 0x4000, scoped, tag = 'input window, operand 3, single buffered']
    #allocation8 [shape = 'u8[8192]{0}', space=vmem, size = 0x2000, scoped, tag = 'output window, operand 0, single buffered']
    %14 = vsyncpa [#allocation3], 0
    %15 = vsyncpa [#allocation6], 0
    %16 = vsyncpa [#allocation4], 0
    // Predicated region
    $region2: #{tpu_custom_call.1} parent=1 // pred_check
      _
    $region3: #{tpu_custom_call.1} parent=1 // pred_check_branch
      %18 = sbr.rel (0) target = $region5
    $region4: #{tpu_custom_call.1} parent=1 // pred_region
      _
    $region5: #{tpu_custom_call.1} parent=1 // pred_fallthru
      _
    // Predicated region
    $region6: #{tpu_custom_call.1} parent=1 // pred_check
      _
    $region7: #{tpu_custom_call.1} parent=1 // pred_check_branch
      %20 = sbr.rel (0) target = $region9
    $region8: #{tpu_custom_call.1} parent=1 // pred_region
      %22 = vsyncadd [#allocation3], 0
      %s23 = sshll.u32 %s1, 4
      %s24 = int_to_ptr.hbm [resolvable:$true] %s23
      %s25 = sshll.u32 [#allocation2], 4
      %s26 = int_to_ptr.vmem [resolvable:$true] %s25
      %31 = dma.hbm_to_vmem [thread:$0]  %s24, 256, %s26, [#allocation3], 128, 128, 8
    $region9: #{tpu_custom_call.1} parent=1 // pred_fallthru
      _
    // Predicated region
    $region10: #{tpu_custom_call.1} parent=1 // pred_check
      _
    $region11: #{tpu_custom_call.1} parent=1 // pred_check_branch
      %33 = sbr.rel (0) target = $region13
    $region12: #{tpu_custom_call.1} parent=1 // pred_region
      %35 = vsyncadd [#allocation6], 0
      %s36 = sshll.u32 %s2, 4
      %s37 = int_to_ptr.hbm [resolvable:$true] %s36
      %s38 = sshll.u32 [#allocation5], 4
      %s39 = int_to_ptr.vmem [resolvable:$true] %s38
      %44 = dma.hbm_to_vmem [thread:$0]  %s37, 512, %s39, [#allocation6], 128, 128, 8
    $region13: #{tpu_custom_call.1} parent=1 // pred_fallthru
      _
    // Predicated region
    $region14: #{tpu_custom_call.1} parent=1 // pred_check
      _
    $region15: #{tpu_custom_call.1} parent=1 // pred_check_branch
      %46 = sbr.rel (0) target = $region17
    $region16: #{tpu_custom_call.1} parent=1 // pred_region
      %48 = vsyncadd [#allocation6], 0
      %s49 = sshll.u32 %s3, 4
      %s50 = int_to_ptr.hbm [resolvable:$true] %s49
      %s51 = sshll.u32 [#allocation7], 4
      %s52 = int_to_ptr.vmem [resolvable:$true] %s51
      %57 = dma.hbm_to_vmem [thread:$0]  %s50, 512, %s52, [#allocation6], 128, 128, 8
    $region17: #{tpu_custom_call.1} parent=1 // pred_fallthru
      _
    // Predicated region
    $region18: #{tpu_custom_call.1} parent=1 // pred_check
      _
    $region19: #{tpu_custom_call.1} parent=1 // pred_check_branch
      %59 = sbr.rel (0) target = $region21
    $region20: #{tpu_custom_call.1} parent=1 // pred_region
      _
    $region21: #{tpu_custom_call.1} parent=1 // pred_fallthru
      _
    // Predicated region
    $region22: #{tpu_custom_call.1} parent=1 // pred_check
      _
    $region23: #{tpu_custom_call.1} parent=1 // pred_check_branch
      %61 = sbr.rel (0) target = $region25
    $region24: #{tpu_custom_call.1} parent=1 // pred_region
      _
    $region25: #{tpu_custom_call.1} parent=1 // pred_fallthru
      _
    // Predicated region
    $region26: #{tpu_custom_call.1} parent=1 // pred_check
      _
    $region27: #{tpu_custom_call.1} parent=1 // pred_check_branch
      %63 = sbr.rel (0) target = $region29
    $region28: #{tpu_custom_call.1} parent=1 // pred_region
      _
    $region29: #{tpu_custom_call.1} parent=1 // pred_fallthru
      _
    // Predicated region
    $region30: #{tpu_custom_call.1} parent=1 // pred_check
      _
    $region31: #{tpu_custom_call.1} parent=1 // pred_check_branch
      %65 = sbr.rel (0) target = $region33
    $region32: #{tpu_custom_call.1} parent=1 // pred_region
      _
    $region33: #{tpu_custom_call.1} parent=1 // pred_fallthru
      _
    // Predicated region
    $region34: #{tpu_custom_call.1} parent=1 // pred_check
      _
    $region35: #{tpu_custom_call.1} parent=1 // pred_check_branch
      %67 = sbr.rel (0) target = $region37
    $region36: #{tpu_custom_call.1} parent=1 // pred_region
      _
    $region37: #{tpu_custom_call.1} parent=1 // pred_fallthru
      _
    // Predicated region
    $region38: #{tpu_custom_call.1} parent=1 // pred_check
      _
    $region39: #{tpu_custom_call.1} parent=1 // pred_check_branch
      %69 = sbr.rel (0) target = $region41
    $region40: #{tpu_custom_call.1} parent=1 // pred_region
      %71 = dma.done [#allocation3], 256
    $region41: #{tpu_custom_call.1} parent=1 // pred_fallthru
      _
    // Predicated region
    $region42: #{tpu_custom_call.1} parent=1 // pred_check
      _
    $region43: #{tpu_custom_call.1} parent=1 // pred_check_branch
      %73 = sbr.rel (0) target = $region45
    $region44: #{tpu_custom_call.1} parent=1 // pred_region
      %75 = dma.done [#allocation6], 512
    $region45: #{tpu_custom_call.1} parent=1 // pred_fallthru
      _
    // Predicated region
    $region46: #{tpu_custom_call.1} parent=1 // pred_check
      _
    $region47: #{tpu_custom_call.1} parent=1 // pred_check_branch
      %77 = sbr.rel (0) target = $region49
    $region48: #{tpu_custom_call.1} parent=1 // pred_region
      %79 = dma.done [#allocation6], 512
    $region49: #{tpu_custom_call.1} parent=1 // pred_fallthru
      _
    %v80 = vld [vmem:[%s0] sm:$0xff]
    %v81 = vld [vmem:[%s0 + $0x8] sm:$0xff]
    %v82 = vld [vmem:[#allocation5] sm:$0xff]
    %v83 = vld [vmem:[#allocation5 + $0x8] sm:$0xff]
    %v84 = vld [vmem:[#allocation5 + $0x10] sm:$0xff]
    %v85 = vld [vmem:[#allocation5 + $0x18] sm:$0xff]
    %v86 = vld [vmem:[#allocation2] sm:$0xff]
    %v87 = vld [vmem:[#allocation2 + $0x8] sm:$0xff]
    %v88 = vld [vmem:[#allocation7] sm:$0xff]
    %v89 = vld [vmem:[#allocation7 + $0x8] sm:$0xff]
    %v90 = vld [vmem:[#allocation7 + $0x10] sm:$0xff]
    %v91 = vld [vmem:[#allocation7 + $0x18] sm:$0xff]
    %vm92 = vcmask 261120
    %v94 = vsel %vm92, %v86, 0
    %v97 = vsel %vm92, %v87, 0
    %99 = vmatpush.msra.mxu0 0.0
    %100 = vmatpush.msra.mxu0 0.0
    %101 = vmatpush.msra.mxu0 0.0
    %102 = vmatpush.msra.mxu0 0.0
    %103 = vmatpush.msra.mxu0 0.0
    %104 = vmatpush.msra.mxu0 0.0
    %105 = vmatpush.msra.mxu0 0.0
    %106 = vmatpush.msra.mxu0 0.0
    %107 = vmatpush.msra.mxu0 0.0
    %108 = vmatpush.msra.mxu0 0.0
    %109 = vmatpush.msra.mxu0 0.0
    %110 = vmatpush.msra.mxu0 0.0
    %111 = vmatpush.msra.mxu0 %v91
    %112 = vmatpush.msra.mxu0 %v90
    %113 = vmatpush.msra.mxu0 %v89
    %114 = vmatpush.msra.mxu0 %v88
    %115 = vmatmul.f32.gmra.mxu0 %v94
    %v116 = vpop.f32.mrf.mxu0
    %v117 = vadd.f32 0.0, %v116
    %118 = vmatmul.f32.gmra.mxu0 %v97
    %v119 = vpop.f32.mrf.mxu0
    %v120 = vadd.f32 0.0, %v119
    %121 = vdwg.mxu0
    %v123 = vsel %vm92, %v80, 0
    %v126 = vsel %vm92, %v81, 0
    %128 = vmatpush.msra.mxu0 0.0
    %129 = vmatpush.msra.mxu0 0.0
    %130 = vmatpush.msra.mxu0 0.0
    %131 = vmatpush.msra.mxu0 0.0
    %132 = vmatpush.msra.mxu0 0.0
    %133 = vmatpush.msra.mxu0 0.0
    %134 = vmatpush.msra.mxu0 0.0
    %135 = vmatpush.msra.mxu0 0.0
    %136 = vmatpush.msra.mxu0 0.0
    %137 = vmatpush.msra.mxu0 0.0
    %138 = vmatpush.msra.mxu0 0.0
    %139 = vmatpush.msra.mxu0 0.0
    %140 = vmatpush.msra.mxu0 %v85
    %141 = vmatpush.msra.mxu0 %v84
    %142 = vmatpush.msra.mxu0 %v83
    %143 = vmatpush.msra.mxu0 %v82
    %144 = vmatmul.f32.gmra.mxu0 %v123
    %v145 = vpop.f32.mrf.mxu0
    %v146 = vadd.f32 %v117, %v145
    %147 = vmatmul.f32.gmra.mxu0 %v126
    %v148 = vpop.f32.mrf.mxu0
    %v149 = vadd.f32 %v120, %v148
    %150 = vdwg.mxu0
    %v151 = vld [vmem:[%s4] sm:$0x1]
    %v153 = vperm.slane %v151, 0
    %v155 = vadd.f32 %v146, %v153
    %v156 = vadd.f32 %v149, %v153
    %v157 = vmul.f32 %v155, 0.5
    %v158 = vmul.f32 %v156, 0.5
    %v159 = vmul.f32 %v155, 0.70710677
    %v160 = vmul.f32 %v156, 0.70710677
    %v161 = vmul.f32 %v159, %v159
    %v162 = vmin.f32 16.0, %v161
    %v163 = vmul.f32 %v162, 2.1237322e-06
    %v164 = vadd.f32 %v163, 0.00028619796
    %v165 = vmul.f32 %v162, %v164
    %v166 = vadd.f32 %v165, 0.0036580483
    %v167 = vmul.f32 %v162, %v166
    %v168 = vadd.f32 %v167, 0.05243302
    %v169 = vmul.f32 %v162, %v168
    %v170 = vadd.f32 %v169, 0.18741608
    %v171 = vmul.f32 %v162, %v170
    %v172 = vadd.f32 %v171, 1.1283791
    %v173 = vmul.f32 %v159, %v172
    %v174 = vmul.f32 %v162, 3.8918573e-05
    %v175 = vadd.f32 %v174, 0.001143296
    %v176 = vmul.f32 %v162, %v175
    %v177 = vadd.f32 %v176, 0.014752088
    %v178 = vmul.f32 %v162, %v177
    %v179 = vadd.f32 %v178, 0.112945676
    %v180 = vmul.f32 %v162, %v179
    %v181 = vadd.f32 %v180, 0.4994258
    %v182 = vmul.f32 %v162, %v181
    %v183 = vadd.f32 %v182, 1.0
    %v184 = vrcp.pop %v183
    %v185 = vmul.f32 %v183, %v184
    %v186 = vsub.f32 1.0, %v185
    %v187 = vmul.f32 %v184, %v186
    %v188 = vadd.f32 %v184, %v187
    %vm189 = vweird.f32 %v183
    %vm190 = vweird.f32 %v184
    %vm191 = vmor %vm189, %vm190
    %v192 = vsel %vm191, %v184, %v188
    %v193 = vand.u32 2147483647, %v183
    %vm194 = vcmp.eq.f32.partialorder %v193, 8.507059e+37
    %v195 = vand.u32 %v183, 2147483648
    %v196 = vor.u32 1.1754944e-38, %v195
    %v197 = vsel %vm194, %v196, %v192
    %v198 = vmul.f32 %v173, %v197
    %v199 = vmin.f32 %v198, 1.0
    %v200 = vmax.f32 %v199, -1.0
    %v201 = vmul.f32 %v160, %v160
    %v202 = vmin.f32 16.0, %v201
    %v203 = vmul.f32 %v202, 2.1237322e-06
    %v204 = vadd.f32 %v203, 0.00028619796
    %v205 = vmul.f32 %v202, %v204
    %v206 = vadd.f32 %v205, 0.0036580483
    %v207 = vmul.f32 %v202, %v206
    %v208 = vadd.f32 %v207, 0.05243302
    %v209 = vmul.f32 %v202, %v208
    %v210 = vadd.f32 %v209, 0.18741608
    %v211 = vmul.f32 %v202, %v210
    %v212 = vadd.f32 %v211, 1.1283791
    %v213 = vmul.f32 %v160, %v212
    %v214 = vmul.f32 %v202, 3.8918573e-05
    %v215 = vadd.f32 %v214, 0.001143296
    %v216 = vmul.f32 %v202, %v215
    %v217 = vadd.f32 %v216, 0.014752088
    %v218 = vmul.f32 %v202, %v217
    %v219 = vadd.f32 %v218, 0.112945676
    %v220 = vmul.f32 %v202, %v219
    %v221 = vadd.f32 %v220, 0.4994258
    %v222 = vmul.f32 %v202, %v221
    %v223 = vadd.f32 %v222, 1.0
    %v224 = vrcp.pop %v223
    %v225 = vmul.f32 %v223, %v224
    %v226 = vsub.f32 1.0, %v225
    %v227 = vmul.f32 %v224, %v226
    %v228 = vadd.f32 %v224, %v227
    %vm229 = vweird.f32 %v223
    %vm230 = vweird.f32 %v224
    %vm231 = vmor %vm229, %vm230
    %v232 = vsel %vm231, %v224, %v228
    %v233 = vand.u32 2147483647, %v223
    %vm234 = vcmp.eq.f32.partialorder %v233, 8.507059e+37
    %v235 = vand.u32 %v223, 2147483648
    %v236 = vor.u32 1.1754944e-38, %v235
    %v237 = vsel %vm234, %v236, %v232
    %v238 = vmul.f32 %v213, %v237
    %v239 = vmin.f32 %v238, 1.0
    %v240 = vmax.f32 %v239, -1.0
    %v241 = vadd.f32 %v200, 1.0
    %v242 = vadd.f32 %v240, 1.0
    %v243 = vmul.f32 %v157, %v241
    %v244 = vmul.f32 %v158, %v242
    %v245 = vld [vmem:[%s5] sm:$0xff]
    %v246 = vld [vmem:[%s5 + $0x8] sm:$0xff]
    %v247 = vld [vmem:[%s5 + $0x10] sm:$0xff]
    %v248 = vld [vmem:[%s5 + $0x18] sm:$0xff]
    %v249 = vld [vmem:[%s5 + $0x20] sm:$0xff]
    %v250 = vld [vmem:[%s5 + $0x28] sm:$0xff]
    %v251 = vld [vmem:[%s5 + $0x30] sm:$0xff]
    %v252 = vld [vmem:[%s5 + $0x38] sm:$0xff]
    %v253 = vld [vmem:[%s5 + $0x40] sm:$0xff]
    %v254 = vld [vmem:[%s5 + $0x48] sm:$0xff]
    %v255 = vld [vmem:[%s5 + $0x50] sm:$0xff]
    %v256 = vld [vmem:[%s5 + $0x58] sm:$0xff]
    %v257 = vld [vmem:[%s5 + $0x60] sm:$0xff]
    %v258 = vld [vmem:[%s5 + $0x68] sm:$0xff]
    %v259 = vld [vmem:[%s5 + $0x70] sm:$0xff]
    %v260 = vld [vmem:[%s5 + $0x78] sm:$0xff]
    %v261 = vld [vmem:[%s6] sm:$0x1]
    %v263 = vperm.slane %v261, 0
    %265 = vmatpush.msra.mxu0 %v260
    %266 = vmatpush.msra.mxu0 %v259
    %267 = vmatpush.msra.mxu0 %v258
    %268 = vmatpush.msra.mxu0 %v257
    %269 = vmatpush.msra.mxu0 %v256
    %270 = vmatpush.msra.mxu0 %v255
    %271 = vmatpush.msra.mxu0 %v254
    %272 = vmatpush.msra.mxu0 %v253
    %273 = vmatpush.msra.mxu0 %v252
    %274 = vmatpush.msra.mxu0 %v251
    %275 = vmatpush.msra.mxu0 %v250
    %276 = vmatpush.msra.mxu0 %v249
    %277 = vmatpush.msra.mxu0 %v248
    %278 = vmatpush.msra.mxu0 %v247
    %279 = vmatpush.msra.mxu0 %v246
    %280 = vmatpush.msra.mxu0 %v245
    %281 = vmatmul.f32.gmra.mxu0 %v243
    %v282 = vpop.f32.mrf.mxu0
    %v283 = vadd.f32 %v263, %v282
    %284 = vmatmul.f32.gmra.mxu0 %v244
    %v285 = vpop.f32.mrf.mxu0
    %v286 = vadd.f32 %v263, %v285
    %287 = vdwg.mxu0
    %v288 = vmul.f32 %v283, 0.5
    %v289 = vmul.f32 %v286, 0.5
    %v290 = vmul.f32 %v283, 0.70710677
    %v291 = vmul.f32 %v286, 0.70710677
    %v292 = vmul.f32 %v290, %v290
    %v293 = vmin.f32 16.0, %v292
    %v294 = vmul.f32 %v293, 2.1237322e-06
    %v295 = vadd.f32 %v294, 0.00028619796
    %v296 = vmul.f32 %v293, %v295
    %v297 = vadd.f32 %v296, 0.0036580483
    %v298 = vmul.f32 %v293, %v297
    %v299 = vadd.f32 %v298, 0.05243302
    %v300 = vmul.f32 %v293, %v299
    %v301 = vadd.f32 %v300, 0.18741608
    %v302 = vmul.f32 %v293, %v301
    %v303 = vadd.f32 %v302, 1.1283791
    %v304 = vmul.f32 %v290, %v303
    %v305 = vmul.f32 %v293, 3.8918573e-05
    %v306 = vadd.f32 %v305, 0.001143296
    %v307 = vmul.f32 %v293, %v306
    %v308 = vadd.f32 %v307, 0.014752088
    %v309 = vmul.f32 %v293, %v308
    %v310 = vadd.f32 %v309, 0.112945676
    %v311 = vmul.f32 %v293, %v310
    %v312 = vadd.f32 %v311, 0.4994258
    %v313 = vmul.f32 %v293, %v312
    %v314 = vadd.f32 %v313, 1.0
    %v315 = vrcp.pop %v314
    %v316 = vmul.f32 %v314, %v315
    %v317 = vsub.f32 1.0, %v316
    %v318 = vmul.f32 %v315, %v317
    %v319 = vadd.f32 %v315, %v318
    %vm320 = vweird.f32 %v314
    %vm321 = vweird.f32 %v315
    %vm322 = vmor %vm320, %vm321
    %v323 = vsel %vm322, %v315, %v319
    %v324 = vand.u32 2147483647, %v314
    %vm325 = vcmp.eq.f32.partialorder %v324, 8.507059e+37
    %v326 = vand.u32 %v314, 2147483648
    %v327 = vor.u32 1.1754944e-38, %v326
    %v328 = vsel %vm325, %v327, %v323
    %v329 = vmul.f32 %v304, %v328
    %v330 = vmin.f32 %v329, 1.0
    %v331 = vmax.f32 %v330, -1.0
    %v332 = vmul.f32 %v291, %v291
    %v333 = vmin.f32 16.0, %v332
    %v334 = vmul.f32 %v333, 2.1237322e-06
    %v335 = vadd.f32 %v334, 0.00028619796
    %v336 = vmul.f32 %v333, %v335
    %v337 = vadd.f32 %v336, 0.0036580483
    %v338 = vmul.f32 %v333, %v337
    %v339 = vadd.f32 %v338, 0.05243302
    %v340 = vmul.f32 %v333, %v339
    %v341 = vadd.f32 %v340, 0.18741608
    %v342 = vmul.f32 %v333, %v341
    %v343 = vadd.f32 %v342, 1.1283791
    %v344 = vmul.f32 %v291, %v343
    %v345 = vmul.f32 %v333, 3.8918573e-05
    %v346 = vadd.f32 %v345, 0.001143296
    %v347 = vmul.f32 %v333, %v346
    %v348 = vadd.f32 %v347, 0.014752088
    %v349 = vmul.f32 %v333, %v348
    %v350 = vadd.f32 %v349, 0.112945676
    %v351 = vmul.f32 %v333, %v350
    %v352 = vadd.f32 %v351, 0.4994258
    %v353 = vmul.f32 %v333, %v352
    %v354 = vadd.f32 %v353, 1.0
    %v355 = vrcp.pop %v354
    %v356 = vmul.f32 %v354, %v355
    %v357 = vsub.f32 1.0, %v356
    %v358 = vmul.f32 %v355, %v357
    %v359 = vadd.f32 %v355, %v358
    %vm360 = vweird.f32 %v354
    %vm361 = vweird.f32 %v355
    %vm362 = vmor %vm360, %vm361
    %v363 = vsel %vm362, %v355, %v359
    %v364 = vand.u32 2147483647, %v354
    %vm365 = vcmp.eq.f32.partialorder %v364, 8.507059e+37
    %v366 = vand.u32 %v354, 2147483648
    %v367 = vor.u32 1.1754944e-38, %v366
    %v368 = vsel %vm365, %v367, %v363
    %v369 = vmul.f32 %v344, %v368
    %v370 = vmin.f32 %v369, 1.0
    %v371 = vmax.f32 %v370, -1.0
    %v372 = vadd.f32 %v331, 1.0
    %v373 = vadd.f32 %v371, 1.0
    %v374 = vmul.f32 %v288, %v372
    %v375 = vmul.f32 %v289, %v373
    %v376 = vld [vmem:[%s7] sm:$0xff]
    %v377 = vld [vmem:[%s7 + $0x8] sm:$0xff]
    %v378 = vld [vmem:[%s7 + $0x10] sm:$0xff]
    %v379 = vld [vmem:[%s7 + $0x18] sm:$0xff]
    %v380 = vld [vmem:[%s7 + $0x20] sm:$0xff]
    %v381 = vld [vmem:[%s7 + $0x28] sm:$0xff]
    %v382 = vld [vmem:[%s7 + $0x30] sm:$0xff]
    %v383 = vld [vmem:[%s7 + $0x38] sm:$0xff]
    %v384 = vld [vmem:[%s7 + $0x40] sm:$0xff]
    %v385 = vld [vmem:[%s7 + $0x48] sm:$0xff]
    %v386 = vld [vmem:[%s7 + $0x50] sm:$0xff]
    %v387 = vld [vmem:[%s7 + $0x58] sm:$0xff]
    %v388 = vld [vmem:[%s7 + $0x60] sm:$0xff]
    %v389 = vld [vmem:[%s7 + $0x68] sm:$0xff]
    %v390 = vld [vmem:[%s7 + $0x70] sm:$0xff]
    %v391 = vld [vmem:[%s7 + $0x78] sm:$0xff]
    %v392 = vld [vmem:[%s8] sm:$0x1]
    %v394 = vperm.slane %v392, 0
    %396 = vmatpush.msra.mxu0 %v391
    %397 = vmatpush.msra.mxu0 %v390
    %398 = vmatpush.msra.mxu0 %v389
    %399 = vmatpush.msra.mxu0 %v388
    %400 = vmatpush.msra.mxu0 %v387
    %401 = vmatpush.msra.mxu0 %v386
    %402 = vmatpush.msra.mxu0 %v385
    %403 = vmatpush.msra.mxu0 %v384
    %404 = vmatpush.msra.mxu0 %v383
    %405 = vmatpush.msra.mxu0 %v382
    %406 = vmatpush.msra.mxu0 %v381
    %407 = vmatpush.msra.mxu0 %v380
    %408 = vmatpush.msra.mxu0 %v379
    %409 = vmatpush.msra.mxu0 %v378
    %410 = vmatpush.msra.mxu0 %v377
    %411 = vmatpush.msra.mxu0 %v376
    %412 = vmatmul.f32.gmra.mxu0 %v374
    %v413 = vpop.f32.mrf.mxu0
    %v414 = vadd.f32 %v394, %v413
    %415 = vmatmul.f32.gmra.mxu0 %v375
    %v416 = vpop.f32.mrf.mxu0
    %v417 = vadd.f32 %v394, %v416
    %418 = vdwg.mxu0
    %vm419 = vcmask 130048
    %420 = vst.msk [vmem:[#allocation8] sm:$0xff] %vm419, %v414
    %421 = vst.msk [vmem:[#allocation8 + $0x8] sm:$0xff] %vm419, %v417
    // Predicated region
    $region50: #{tpu_custom_call.1} parent=1 // pred_check
      _
    $region51: #{tpu_custom_call.1} parent=1 // pred_check_branch
      %423 = sbr.rel (0) target = $region53
    $region52: #{tpu_custom_call.1} parent=1 // pred_region
      %425 = vsyncadd [#allocation4], 0
      %s426 = sshll.u32 [#allocation8], 4
      %s427 = int_to_ptr.vmem [resolvable:$true] %s426
      %s428 = sshll.u32 %s9, 4
      %s429 = int_to_ptr.hbm [resolvable:$true] %s428
      %434 = dma.vmem_to_hbm [thread:$0]  %s427, 256, %s429, [#allocation4], 128, 128, 8
    $region53: #{tpu_custom_call.1} parent=1 // pred_fallthru
      _
    // Predicated region
    $region54: #{tpu_custom_call.1} parent=1 // pred_check
      _
    $region55: #{tpu_custom_call.1} parent=1 // pred_check_branch
      %436 = sbr.rel (0) target = $region57
    $region56: #{tpu_custom_call.1} parent=1 // pred_region
      %438 = dma.done [#allocation4], 256
    $region57: #{tpu_custom_call.1} parent=1 // pred_fallthru
      _
    %439 = vsyncpa [#allocation3], 1
    %440 = vsyncpa [#allocation6], 1
    %441 = vsyncpa [#allocation4], 1

</llo_original>
